<compile_context>
chip_gen: v5e
topology: v5e:2x2
jax: 0.10.0
libtpu: 0.0.40
codegen_flags: <defaults>
</compile_context>

<pallas_src>
import functools
import math

import jax
import jax.numpy as jnp
from jax import lax
from jax.experimental import pallas as pl
from jax.experimental.pallas import tpu as pltpu


def mha_kernel(x_ref, wqkv_ref, bqkv_ref, wp_ref, bp_ref, o_ref,
               x2_ref, qkv_ref, gslab_ref, acc_ref, *,
               num_heads, emb_size, head_dim, group_heads, block_b, seq_len):
    """One grid step == `block_b` batch elements.

    Inputs:
      x_ref    : (block_b, N, E) f32        input tokens
      wqkv_ref : (n_groups, E, 3*GD) bf16   per-head-group [Wq|Wk|Wv]^T (Wq pre-scaled)
      bqkv_ref : (n_groups, 1, 3*GD) f32    per-head-group biases (bq pre-scaled)
      wp_ref   : (n_groups, GD, E) bf16     projection weight row-blocks
      bp_ref   : (1, E) f32                 projection bias
      o_ref    : (block_b, N, E) f32        output
    Scratch (VMEM), rows = block_b * N, GD = group_heads * head_dim:
      x2_ref    : (rows, E) bf16      flattened bf16 activations
      qkv_ref   : (rows, 3*GD) f32    current group's Q|K|V projection
      gslab_ref : (rows, GD) f32      current group's attention outputs
      acc_ref   : (rows, E) f32       output-projection accumulator
    """
    rows = block_b * seq_len
    gd = group_heads * head_dim
    n_groups = num_heads // group_heads
    bf16 = jnp.bfloat16

    # Flatten + cast the activations once; all matmul operands below are bf16
    # with f32 accumulation on the MXU.
    x2_ref[...] = x_ref[...].reshape(rows, emb_size).astype(bf16)
    acc_ref[...] = jnp.zeros_like(acc_ref)

    def group_body(j, carry):
        # ---- this head group's fused Q|K|V projection: (rows, E) @ (E, 3*GD) ----
        qkv_ref[...] = (jnp.dot(x2_ref[...], wqkv_ref[j],
                                preferred_element_type=jnp.float32)
                        + bqkv_ref[j])

        def batch_body(b, carry_b):
            r0 = pl.multiple_of(b * seq_len, seq_len)
            qkv_b = qkv_ref[pl.ds(r0, seq_len), :]            # (N, 3*GD) f32
            for g in range(group_heads):                       # static lane offsets
                c = g * head_dim
                qh = qkv_b[:, c:c + head_dim].astype(bf16)     # pre-scaled by 1/sqrt(E)
                kh = qkv_b[:, gd + c:gd + c + head_dim].astype(bf16)
                vh = qkv_b[:, 2 * gd + c:2 * gd + c + head_dim].astype(bf16)
                # q @ k^T without materializing a transpose: contract last dims.
                energy = lax.dot_general(
                    qh, kh, (((1,), (1,)), ((), ())),
                    preferred_element_type=jnp.float32)        # (N, N) f32
                m = jnp.max(energy, axis=-1, keepdims=True)
                p = jnp.exp(energy - m)
                denom = jnp.sum(p, axis=-1, keepdims=True)
                inv = pl.reciprocal(denom, approx=True)        # EUP slot
                inv = inv * (2.0 - denom * inv)                # Newton step -> ~f32 exact
                att = (p * inv).astype(bf16)                   # softmax (dropout = identity)
                gslab_ref[pl.ds(r0, seq_len), c:c + head_dim] = jnp.dot(
                    att, vh, preferred_element_type=jnp.float32)
            return carry_b

        lax.fori_loop(0, block_b, batch_body, 0, unroll=True)

        # ---- this group's share of the output projection: (rows, GD) @ (GD, E) ----
        acc_ref[...] += jnp.dot(gslab_ref[...].astype(bf16), wp_ref[j],
                                preferred_element_type=jnp.float32)
        return carry

    lax.fori_loop(0, n_groups, group_body, 0)

    out = acc_ref[...] + bp_ref[...]
    o_ref[...] = out.reshape(block_b, seq_len, emb_size).astype(o_ref.dtype)


def pick_group_heads(num_heads, head_dim):
    """Largest head count per group such that the group lane width <= 128."""
    for cand in range(num_heads, 0, -1):
        if num_heads % cand == 0 and cand * head_dim <= 128:
            return cand
    return 1


def pack_params(params, emb_size, num_heads):
    """Group heads (lane width <= 128), fuse per-group [Wq|Wk|Wv], fold the
    1/sqrt(emb_size) scale into the Q weights/bias, and pre-cast weights to
    bf16 (accumulation stays f32 in-kernel)."""
    head_dim = emb_size // num_heads
    group_heads = pick_group_heads(num_heads, head_dim)
    gd = group_heads * head_dim
    n_groups = num_heads // group_heads
    inv_scale = 1.0 / (emb_size ** 0.5)        # matches torch: emb_size ** (1/2)

    wq = params["wq_t"] * inv_scale
    bq = params["bq"] * inv_scale
    wqkv_g, bqkv_g = [], []
    for j in range(n_groups):
        cs = slice(j * gd, (j + 1) * gd)
        wqkv_g.append(jnp.concatenate(
            [wq[:, cs], params["wk_t"][:, cs], params["wv_t"][:, cs]], axis=1))
        bqkv_g.append(jnp.concatenate(
            [bq[:, cs], params["bk"][:, cs], params["bv"][:, cs]], axis=1))
    return {
        "wqkv_g": jnp.stack(wqkv_g, 0).astype(jnp.bfloat16),   # (n_groups, E, 3*gd)
        "bqkv_g": jnp.stack(bqkv_g, 0),                        # (n_groups, 1, 3*gd) f32
        "wp_g": params["wp_t"].reshape(n_groups, gd, emb_size).astype(jnp.bfloat16),
        "bp": params["bp"],                                    # (1, E) f32
        "group_heads": group_heads,
    }


def multi_head_attention(x, packed, num_heads, block_b=None):
    """x: (B, N, E) float32.  packed: output of pack_params()."""
    B, N, E = x.shape
    H = num_heads
    D = E // H
    G = int(packed["group_heads"])
    GD = G * D
    n_groups = H // G

    if block_b is None:
        # Keep >= 2 grid steps whenever B allows (v7x has 2 TensorCores, and a
        # 1-step grid also disables the DMA<->compute pipeline); grow the block
        # while the (block_b, N, E) activation slab stays a few MiB.
        block_b = 1
        while (B % (block_b * 2) == 0 and B // (block_b * 2) >= 2
               and block_b * 2 * N * E * x.dtype.itemsize <= (4 << 20)):
            block_b *= 2
    assert B % block_b == 0
    rows = block_b * N

    kernel = functools.partial(
        mha_kernel, num_heads=H, emb_size=E, head_dim=D,
        group_heads=G, block_b=block_b, seq_len=N)

    # VMEM budget derived from the actual blocks (not a hardcoded cap):
    # double-buffered x/out blocks + resident bf16 weights + scratch + headroom.
    blk_bytes = block_b * N * E * x.dtype.itemsize
    weight_bytes = sum(int(packed[k].size) * packed[k].dtype.itemsize
                       for k in ("wqkv_g", "bqkv_g", "wp_g", "bp"))
    scratch_bytes = (rows * E * 2            # x2 (bf16)
                     + rows * 3 * GD * 4     # per-group qkv (f32)
                     + rows * GD * 4         # group attention outputs (f32)
                     + rows * E * 4)         # projection accumulator (f32)
    need = 4 * blk_bytes + weight_bytes + scratch_bytes
    vmem_limit = int(min(max(need + (16 << 20), 32 << 20), 96 << 20))

    # Advisory cost estimate for XLA's scheduler.
    flops = (2 * B * N * E * (3 * E)            # QKV projection
             + 2 * 2 * B * H * N * N * D        # q@k^T and att@v
             + 2 * B * N * E * E)               # output projection
    transcendentals = B * H * N * N             # exp in softmax
    bytes_accessed = 2 * x.size * x.dtype.itemsize + weight_bytes

    return pl.pallas_call(
        kernel,
        out_shape=jax.ShapeDtypeStruct((B, N, E), x.dtype),
        grid_spec=pltpu.PrefetchScalarGridSpec(
            num_scalar_prefetch=0,
            grid=(B // block_b,),
            in_specs=[
                pl.BlockSpec((block_b, N, E), lambda g: (g, 0, 0)),        # x
                # Constant index maps: weights stay VMEM-resident across grid
                # steps (no re-DMA).  On v7x (64 MiB VMEM) these could also be
                # single-buffered to halve their footprint.
                pl.BlockSpec((n_groups, E, 3 * GD), lambda g: (0, 0, 0)),  # Wqkv groups
                pl.BlockSpec((n_groups, 1, 3 * GD), lambda g: (0, 0, 0)),  # bqkv groups
                pl.BlockSpec((n_groups, GD, E), lambda g: (0, 0, 0)),      # Wp row-blocks
                pl.BlockSpec((1, E), lambda g: (0, 0)),                    # bp
            ],
            out_specs=pl.BlockSpec((block_b, N, E), lambda g: (g, 0, 0)),
            scratch_shapes=[
                pltpu.VMEM((rows, E), jnp.bfloat16),        # x2
                pltpu.VMEM((rows, 3 * GD), jnp.float32),    # per-group qkv
                pltpu.VMEM((rows, GD), jnp.float32),        # group attention outputs
                pltpu.VMEM((rows, E), jnp.float32),         # projection accumulator
            ]),
        compiler_params=pltpu.CompilerParams(
            dimension_semantics=("parallel",),
            vmem_limit_bytes=vmem_limit),
        cost_estimate=pl.CostEstimate(
            flops=flops, transcendentals=transcendentals,
            bytes_accessed=bytes_accessed),
    )(x, packed["wqkv_g"], packed["bqkv_g"], packed["wp_g"], packed["bp"])


def init_params(key, emb_size):
    """Deterministic synthetic parameters (PyTorch Linear weight shape (out, in))."""
    keys = jax.random.split(key, 8)
    bound = 1.0 / math.sqrt(emb_size)

    def lin(kw, kb):
        w = jax.random.uniform(kw, (emb_size, emb_size), jnp.float32, -bound, bound)
        b = jax.random.uniform(kb, (emb_size,), jnp.float32, -bound, bound)
        return w, b

    wq, bq = lin(keys[0], keys[1])
    wk, bk = lin(keys[2], keys[3])
    wv, bv = lin(keys[4], keys[5])
    wp, bp = lin(keys[6], keys[7])
    # Pre-transpose weights to (in, out) and make biases 2-D for the kernel.
    return {
        "wq_t": wq.T, "bq": bq[None, :],
        "wk_t": wk.T, "bk": bk[None, :],
        "wv_t": wv.T, "bv": bv[None, :],
        "wp_t": wp.T, "bp": bp[None, :],
    }


def reference_mha(x, params, num_heads):
    """Plain-JAX f32 reference mirroring the PyTorch module (eval, no mask/query)."""
    B, N, E = x.shape
    D = E // num_heads
    q = x @ params["wq_t"] + params["bq"][0]
    k = x @ params["wk_t"] + params["bk"][0]
    v = x @ params["wv_t"] + params["bv"][0]
    q = q.reshape(B, N, num_heads, D).transpose(0, 2, 1, 3)
    k = k.reshape(B, N, num_heads, D).transpose(0, 2, 1, 3)
    v = v.reshape(B, N, num_heads, D).transpose(0, 2, 1, 3)
    energy = jnp.einsum("bhqd,bhkd->bhqk", q, k)
    att = jax.nn.softmax(energy / (E ** 0.5), axis=-1)
    out = jnp.einsum("bhal,bhlv->bhav", att, v)
    out = out.transpose(0, 2, 1, 3).reshape(B, N, E)
    return out @ params["wp_t"] + params["bp"][0]


if __name__ == "__main__":
    B, N, E, H = 2, 8, 32, 4   # batch, seq, emb_size, num_heads (E % H == 0)

    key = jax.random.PRNGKey(0)
    kx, kp = jax.random.split(key)
    x = jax.random.normal(kx, (B, N, E), jnp.float32)
    params = init_params(kp, E)
    packed = pack_params(params, E, H)

    out = multi_head_attention(x, packed, H)
    out = jax.block_until_ready(out)

    ref = reference_mha(x, params, H)
    assert out.shape == (B, N, E)
    # Kernel uses bf16 MXU operands with f32 accumulation, so compare against
    # the f32 reference with a bf16-appropriate tolerance.
    assert jnp.allclose(out, ref, atol=2e-2, rtol=2e-2), (
        "Pallas output mismatch vs reference, max abs err = "
        f"{jnp.max(jnp.abs(out - ref))}")

    print("KERNEL_OK")
</pallas_src>

<mosaic_0001>
module attributes {stable_mosaic.version = 11 : i64} {
  func.func @mha_kernel(%arg0: i32, %arg1: memref<1x8x32xf32, #tpu.memory_space<vmem>>, %arg2: memref<1x32x96xbf16, #tpu.memory_space<vmem>>, %arg3: memref<1x1x96xf32, #tpu.memory_space<vmem>>, %arg4: memref<1x32x32xbf16, #tpu.memory_space<vmem>>, %arg5: memref<1x32xf32, #tpu.memory_space<vmem>>, %arg6: memref<1x8x32xf32, #tpu.memory_space<vmem>>, %arg7: memref<8x32xbf16, #tpu.memory_space<vmem>>, %arg8: memref<8x96xf32, #tpu.memory_space<vmem>>, %arg9: memref<8x32xf32, #tpu.memory_space<vmem>>, %arg10: memref<8x32xf32, #tpu.memory_space<vmem>>) attributes {dimension_semantics = [#tpu.dimension_semantics<parallel>], iteration_bounds = array<i64: 2>, scalar_prefetch = 0 : i64, scratch_operands = 4 : i64, tpu.core_type = #tpu.core_type<tc>, window_params = [{transform_indices = @transform_0, window_bounds = array<i64: 1, 8, 32>}, {pipeline_mode = #tpu.pipeline_mode<synchronous>, transform_indices = @transform_1, window_bounds = array<i64: 1, 32, 96>}, {pipeline_mode = #tpu.pipeline_mode<synchronous>, transform_indices = @transform_2, window_bounds = array<i64: 1, 1, 96>}, {pipeline_mode = #tpu.pipeline_mode<synchronous>, transform_indices = @transform_3, window_bounds = array<i64: 1, 32, 32>}, {pipeline_mode = #tpu.pipeline_mode<synchronous>, transform_indices = @transform_4, window_bounds = array<i64: 1, 32>}, {transform_indices = @transform_5, window_bounds = array<i64: 1, 8, 32>}]} {
    %c0 = arith.constant 0 : index
    %c0_0 = arith.constant 0 : index
    %c0_1 = arith.constant 0 : index
    %0 = vector.load %arg1[%c0, %c0_0, %c0_1] : memref<1x8x32xf32, #tpu.memory_space<vmem>>, vector<1x8x32xf32>
    %1 = vector.shape_cast %0 : vector<1x8x32xf32> to vector<8x32xf32>
    %2 = arith.truncf %1 : vector<8x32xf32> to vector<8x32xbf16>
    %c0_2 = arith.constant 0 : index
    %c0_3 = arith.constant 0 : index
    %3 = vector.load %arg7[%c0_2, %c0_3] : memref<8x32xbf16, #tpu.memory_space<vmem>>, vector<8x32xbf16>
    tpu.vector_store %arg7[%c0_2, %c0_3], %2 {strides = array<i32>} : memref<8x32xbf16, #tpu.memory_space<vmem>>, vector<8x32xbf16>,
    %cst = arith.constant 0.000000e+00 : f32
    %4 = vector.broadcast %cst : f32 to vector<8x32xf32>
    %c0_4 = arith.constant 0 : index
    %c0_5 = arith.constant 0 : index
    %5 = vector.load %arg10[%c0_4, %c0_5] : memref<8x32xf32, #tpu.memory_space<vmem>>, vector<8x32xf32>
    tpu.vector_store %arg10[%c0_4, %c0_5], %4 {strides = array<i32>} : memref<8x32xf32, #tpu.memory_space<vmem>>, vector<8x32xf32>,
    %c0_i32 = arith.constant 0 : i32
    %c0_6 = arith.constant 0 : index
    %c0_7 = arith.constant 0 : index
    %6 = vector.load %arg7[%c0_6, %c0_7] : memref<8x32xbf16, #tpu.memory_space<vmem>>, vector<8x32xbf16>
    %7 = arith.index_cast %c0_i32 : i32 to index
    %c0_8 = arith.constant 0 : index
    %c0_9 = arith.constant 0 : index
    %8 = vector.load %arg2[%7, %c0_8, %c0_9] : memref<1x32x96xbf16, #tpu.memory_space<vmem>>, vector<1x32x96xbf16>
    %9 = vector.shape_cast %8 : vector<1x32x96xbf16> to vector<32x96xbf16>
    %cst_10 = arith.constant dense<0.000000e+00> : vector<8x96xf32>
    %10 = tpu.matmul %6, %9, %cst_10 {dimension_numbers = #tpu.dot_dimension_numbers<[1], [0], [0], [1], [0, 0, 1, 1], [], []>} : vector<8x32xbf16>, vector<32x96xbf16>, vector<8x96xf32> -> vector<8x96xf32>
    %11 = arith.index_cast %c0_i32 : i32 to index
    %c0_11 = arith.constant 0 : index
    %c0_12 = arith.constant 0 : index
    %12 = vector.load %arg3[%11, %c0_11, %c0_12] : memref<1x1x96xf32, #tpu.memory_space<vmem>>, vector<1x1x96xf32>
    %13 = vector.shape_cast %12 : vector<1x1x96xf32> to vector<1x96xf32>
    %14 = vector.broadcast %13 : vector<1x96xf32> to vector<8x96xf32>
    %15 = arith.addf %10, %14 : vector<8x96xf32>
    %c0_13 = arith.constant 0 : index
    %c0_14 = arith.constant 0 : index
    %16 = vector.load %arg8[%c0_13, %c0_14] : memref<8x96xf32, #tpu.memory_space<vmem>>, vector<8x96xf32>
    tpu.vector_store %arg8[%c0_13, %c0_14], %15 {strides = array<i32>} : memref<8x96xf32, #tpu.memory_space<vmem>>, vector<8x96xf32>,
    %c0_i32_15 = arith.constant 0 : i32
    %c8_i32 = arith.constant 8 : i32
    %17 = arith.muli %c0_i32_15, %c8_i32 : i32
    %18 = tpu.assume_multiple %17, 8 : i32
    %19 = arith.index_cast %18 : i32 to index
    %c0_16 = arith.constant 0 : index
    %20 = vector.load %arg8[%19, %c0_16] : memref<8x96xf32, #tpu.memory_space<vmem>>, vector<8x96xf32>
    %21 = vector.extract_strided_slice %20 {offsets = [0, 0], sizes = [8, 8], strides = [1, 1]} : vector<8x96xf32> to vector<8x8xf32>
    %22 = arith.truncf %21 : vector<8x8xf32> to vector<8x8xbf16>
    %23 = vector.extract_strided_slice %20 {offsets = [0, 32], sizes = [8, 8], strides = [1, 1]} : vector<8x96xf32> to vector<8x8xf32>
    %24 = arith.truncf %23 : vector<8x8xf32> to vector<8x8xbf16>
    %25 = vector.extract_strided_slice %20 {offsets = [0, 64], sizes = [8, 8], strides = [1, 1]} : vector<8x96xf32> to vector<8x8xf32>
    %26 = arith.truncf %25 : vector<8x8xf32> to vector<8x8xbf16>
    %cst_17 = arith.constant dense<0.000000e+00> : vector<8x8xf32>
    %27 = tpu.matmul %22, %24, %cst_17 {dimension_numbers = #tpu.dot_dimension_numbers<[1], [1], [0], [0], [0, 0, 1, 0], [], []>} : vector<8x8xbf16>, vector<8x8xbf16>, vector<8x8xf32> -> vector<8x8xf32>
    %cst_18 = arith.constant dense<0xFF800000> : vector<8xf32>
    %28 = vector.multi_reduction <maximumf>, %27, %cst_18 [1] : vector<8x8xf32> to vector<8xf32>
    %29 = vector.shape_cast %28 : vector<8xf32> to vector<8x1xf32>
    %30 = vector.broadcast %29 : vector<8x1xf32> to vector<8x8xf32>
    %31 = arith.subf %27, %30 : vector<8x8xf32>
    %32 = math.exp %31 : vector<8x8xf32>
    %cst_19 = arith.constant dense<0.000000e+00> : vector<8xf32>
    %33 = vector.multi_reduction <add>, %32, %cst_19 [1] : vector<8x8xf32> to vector<8xf32>
    %34 = vector.shape_cast %33 : vector<8xf32> to vector<8x1xf32>
    %35 = tpu.reciprocal %34 {approx = true} : vector<8x1xf32> -> vector<8x1xf32>
    %36 = arith.mulf %34, %35 : vector<8x1xf32>
    %cst_20 = arith.constant 2.000000e+00 : f32
    %37 = vector.broadcast %cst_20 : f32 to vector<8x1xf32>
    %38 = arith.subf %37, %36 : vector<8x1xf32>
    %39 = arith.mulf %35, %38 : vector<8x1xf32>
    %40 = vector.broadcast %39 : vector<8x1xf32> to vector<8x8xf32>
    %41 = arith.mulf %32, %40 : vector<8x8xf32>
    %42 = arith.truncf %41 : vector<8x8xf32> to vector<8x8xbf16>
    %cst_21 = arith.constant dense<0.000000e+00> : vector<8x8xf32>
    %43 = tpu.matmul %42, %26, %cst_21 {dimension_numbers = #tpu.dot_dimension_numbers<[1], [0], [0], [1], [0, 0, 1, 1], [], []>} : vector<8x8xbf16>, vector<8x8xbf16>, vector<8x8xf32> -> vector<8x8xf32>
    %44 = arith.index_cast %18 : i32 to index
    %c0_22 = arith.constant 0 : index
    %45 = vector.load %arg9[%44, %c0_22] : memref<8x32xf32, #tpu.memory_space<vmem>>, vector<8x8xf32>
    tpu.vector_store %arg9[%44, %c0_22], %43 {strides = array<i32>} : memref<8x32xf32, #tpu.memory_space<vmem>>, vector<8x8xf32>,
    %46 = vector.extract_strided_slice %20 {offsets = [0, 8], sizes = [8, 8], strides = [1, 1]} : vector<8x96xf32> to vector<8x8xf32>
    %47 = arith.truncf %46 : vector<8x8xf32> to vector<8x8xbf16>
    %48 = vector.extract_strided_slice %20 {offsets = [0, 40], sizes = [8, 8], strides = [1, 1]} : vector<8x96xf32> to vector<8x8xf32>
    %49 = arith.truncf %48 : vector<8x8xf32> to vector<8x8xbf16>
    %50 = vector.extract_strided_slice %20 {offsets = [0, 72], sizes = [8, 8], strides = [1, 1]} : vector<8x96xf32> to vector<8x8xf32>
    %51 = arith.truncf %50 : vector<8x8xf32> to vector<8x8xbf16>
    %cst_23 = arith.constant dense<0.000000e+00> : vector<8x8xf32>
    %52 = tpu.matmul %47, %49, %cst_23 {dimension_numbers = #tpu.dot_dimension_numbers<[1], [1], [0], [0], [0, 0, 1, 0], [], []>} : vector<8x8xbf16>, vector<8x8xbf16>, vector<8x8xf32> -> vector<8x8xf32>
    %cst_24 = arith.constant dense<0xFF800000> : vector<8xf32>
    %53 = vector.multi_reduction <maximumf>, %52, %cst_24 [1] : vector<8x8xf32> to vector<8xf32>
    %54 = vector.shape_cast %53 : vector<8xf32> to vector<8x1xf32>
    %55 = vector.broadcast %54 : vector<8x1xf32> to vector<8x8xf32>
    %56 = arith.subf %52, %55 : vector<8x8xf32>
    %57 = math.exp %56 : vector<8x8xf32>
    %cst_25 = arith.constant dense<0.000000e+00> : vector<8xf32>
    %58 = vector.multi_reduction <add>, %57, %cst_25 [1] : vector<8x8xf32> to vector<8xf32>
    %59 = vector.shape_cast %58 : vector<8xf32> to vector<8x1xf32>
    %60 = tpu.reciprocal %59 {approx = true} : vector<8x1xf32> -> vector<8x1xf32>
    %61 = arith.mulf %59, %60 : vector<8x1xf32>
    %cst_26 = arith.constant 2.000000e+00 : f32
    %62 = vector.broadcast %cst_26 : f32 to vector<8x1xf32>
    %63 = arith.subf %62, %61 : vector<8x1xf32>
    %64 = arith.mulf %60, %63 : vector<8x1xf32>
    %65 = vector.broadcast %64 : vector<8x1xf32> to vector<8x8xf32>
    %66 = arith.mulf %57, %65 : vector<8x8xf32>
    %67 = arith.truncf %66 : vector<8x8xf32> to vector<8x8xbf16>
    %cst_27 = arith.constant dense<0.000000e+00> : vector<8x8xf32>
    %68 = tpu.matmul %67, %51, %cst_27 {dimension_numbers = #tpu.dot_dimension_numbers<[1], [0], [0], [1], [0, 0, 1, 1], [], []>} : vector<8x8xbf16>, vector<8x8xbf16>, vector<8x8xf32> -> vector<8x8xf32>
    %69 = arith.index_cast %18 : i32 to index
    %c8 = arith.constant 8 : index
    %70 = vector.load %arg9[%69, %c8] : memref<8x32xf32, #tpu.memory_space<vmem>>, vector<8x8xf32>
    tpu.vector_store %arg9[%69, %c8], %68 {strides = array<i32>} : memref<8x32xf32, #tpu.memory_space<vmem>>, vector<8x8xf32>,
    %71 = vector.extract_strided_slice %20 {offsets = [0, 16], sizes = [8, 8], strides = [1, 1]} : vector<8x96xf32> to vector<8x8xf32>
    %72 = arith.truncf %71 : vector<8x8xf32> to vector<8x8xbf16>
    %73 = vector.extract_strided_slice %20 {offsets = [0, 48], sizes = [8, 8], strides = [1, 1]} : vector<8x96xf32> to vector<8x8xf32>
    %74 = arith.truncf %73 : vector<8x8xf32> to vector<8x8xbf16>
    %75 = vector.extract_strided_slice %20 {offsets = [0, 80], sizes = [8, 8], strides = [1, 1]} : vector<8x96xf32> to vector<8x8xf32>
    %76 = arith.truncf %75 : vector<8x8xf32> to vector<8x8xbf16>
    %cst_28 = arith.constant dense<0.000000e+00> : vector<8x8xf32>
    %77 = tpu.matmul %72, %74, %cst_28 {dimension_numbers = #tpu.dot_dimension_numbers<[1], [1], [0], [0], [0, 0, 1, 0], [], []>} : vector<8x8xbf16>, vector<8x8xbf16>, vector<8x8xf32> -> vector<8x8xf32>
    %cst_29 = arith.constant dense<0xFF800000> : vector<8xf32>
    %78 = vector.multi_reduction <maximumf>, %77, %cst_29 [1] : vector<8x8xf32> to vector<8xf32>
    %79 = vector.shape_cast %78 : vector<8xf32> to vector<8x1xf32>
    %80 = vector.broadcast %79 : vector<8x1xf32> to vector<8x8xf32>
    %81 = arith.subf %77, %80 : vector<8x8xf32>
    %82 = math.exp %81 : vector<8x8xf32>
    %cst_30 = arith.constant dense<0.000000e+00> : vector<8xf32>
    %83 = vector.multi_reduction <add>, %82, %cst_30 [1] : vector<8x8xf32> to vector<8xf32>
    %84 = vector.shape_cast %83 : vector<8xf32> to vector<8x1xf32>
    %85 = tpu.reciprocal %84 {approx = true} : vector<8x1xf32> -> vector<8x1xf32>
    %86 = arith.mulf %84, %85 : vector<8x1xf32>
    %cst_31 = arith.constant 2.000000e+00 : f32
    %87 = vector.broadcast %cst_31 : f32 to vector<8x1xf32>
    %88 = arith.subf %87, %86 : vector<8x1xf32>
    %89 = arith.mulf %85, %88 : vector<8x1xf32>
    %90 = vector.broadcast %89 : vector<8x1xf32> to vector<8x8xf32>
    %91 = arith.mulf %82, %90 : vector<8x8xf32>
    %92 = arith.truncf %91 : vector<8x8xf32> to vector<8x8xbf16>
    %cst_32 = arith.constant dense<0.000000e+00> : vector<8x8xf32>
    %93 = tpu.matmul %92, %76, %cst_32 {dimension_numbers = #tpu.dot_dimension_numbers<[1], [0], [0], [1], [0, 0, 1, 1], [], []>} : vector<8x8xbf16>, vector<8x8xbf16>, vector<8x8xf32> -> vector<8x8xf32>
    %94 = arith.index_cast %18 : i32 to index
    %c16 = arith.constant 16 : index
    %95 = vector.load %arg9[%94, %c16] : memref<8x32xf32, #tpu.memory_space<vmem>>, vector<8x8xf32>
    tpu.vector_store %arg9[%94, %c16], %93 {strides = array<i32>} : memref<8x32xf32, #tpu.memory_space<vmem>>, vector<8x8xf32>,
    %96 = vector.extract_strided_slice %20 {offsets = [0, 24], sizes = [8, 8], strides = [1, 1]} : vector<8x96xf32> to vector<8x8xf32>
    %97 = arith.truncf %96 : vector<8x8xf32> to vector<8x8xbf16>
    %98 = vector.extract_strided_slice %20 {offsets = [0, 56], sizes = [8, 8], strides = [1, 1]} : vector<8x96xf32> to vector<8x8xf32>
    %99 = arith.truncf %98 : vector<8x8xf32> to vector<8x8xbf16>
    %100 = vector.extract_strided_slice %20 {offsets = [0, 88], sizes = [8, 8], strides = [1, 1]} : vector<8x96xf32> to vector<8x8xf32>
    %101 = arith.truncf %100 : vector<8x8xf32> to vector<8x8xbf16>
    %cst_33 = arith.constant dense<0.000000e+00> : vector<8x8xf32>
    %102 = tpu.matmul %97, %99, %cst_33 {dimension_numbers = #tpu.dot_dimension_numbers<[1], [1], [0], [0], [0, 0, 1, 0], [], []>} : vector<8x8xbf16>, vector<8x8xbf16>, vector<8x8xf32> -> vector<8x8xf32>
    %cst_34 = arith.constant dense<0xFF800000> : vector<8xf32>
    %103 = vector.multi_reduction <maximumf>, %102, %cst_34 [1] : vector<8x8xf32> to vector<8xf32>
    %104 = vector.shape_cast %103 : vector<8xf32> to vector<8x1xf32>
    %105 = vector.broadcast %104 : vector<8x1xf32> to vector<8x8xf32>
    %106 = arith.subf %102, %105 : vector<8x8xf32>
    %107 = math.exp %106 : vector<8x8xf32>
    %cst_35 = arith.constant dense<0.000000e+00> : vector<8xf32>
    %108 = vector.multi_reduction <add>, %107, %cst_35 [1] : vector<8x8xf32> to vector<8xf32>
    %109 = vector.shape_cast %108 : vector<8xf32> to vector<8x1xf32>
    %110 = tpu.reciprocal %109 {approx = true} : vector<8x1xf32> -> vector<8x1xf32>
    %111 = arith.mulf %109, %110 : vector<8x1xf32>
    %cst_36 = arith.constant 2.000000e+00 : f32
    %112 = vector.broadcast %cst_36 : f32 to vector<8x1xf32>
    %113 = arith.subf %112, %111 : vector<8x1xf32>
    %114 = arith.mulf %110, %113 : vector<8x1xf32>
    %115 = vector.broadcast %114 : vector<8x1xf32> to vector<8x8xf32>
    %116 = arith.mulf %107, %115 : vector<8x8xf32>
    %117 = arith.truncf %116 : vector<8x8xf32> to vector<8x8xbf16>
    %cst_37 = arith.constant dense<0.000000e+00> : vector<8x8xf32>
    %118 = tpu.matmul %117, %101, %cst_37 {dimension_numbers = #tpu.dot_dimension_numbers<[1], [0], [0], [1], [0, 0, 1, 1], [], []>} : vector<8x8xbf16>, vector<8x8xbf16>, vector<8x8xf32> -> vector<8x8xf32>
    %119 = arith.index_cast %18 : i32 to index
    %c24 = arith.constant 24 : index
    %120 = vector.load %arg9[%119, %c24] : memref<8x32xf32, #tpu.memory_space<vmem>>, vector<8x8xf32>
    tpu.vector_store %arg9[%119, %c24], %118 {strides = array<i32>} : memref<8x32xf32, #tpu.memory_space<vmem>>, vector<8x8xf32>,
    %c1_i32 = arith.constant 1 : i32
    %c0_38 = arith.constant 0 : index
    %c0_39 = arith.constant 0 : index
    %121 = vector.load %arg10[%c0_38, %c0_39] : memref<8x32xf32, #tpu.memory_space<vmem>>, vector<8x32xf32>
    %c0_40 = arith.constant 0 : index
    %c0_41 = arith.constant 0 : index
    %122 = vector.load %arg9[%c0_40, %c0_41] : memref<8x32xf32, #tpu.memory_space<vmem>>, vector<8x32xf32>
    %123 = arith.truncf %122 : vector<8x32xf32> to vector<8x32xbf16>
    %124 = arith.index_cast %c0_i32 : i32 to index
    %c0_42 = arith.constant 0 : index
    %c0_43 = arith.constant 0 : index
    %125 = vector.load %arg4[%124, %c0_42, %c0_43] : memref<1x32x32xbf16, #tpu.memory_space<vmem>>, vector<1x32x32xbf16>
    %126 = vector.shape_cast %125 : vector<1x32x32xbf16> to vector<32x32xbf16>
    %cst_44 = arith.constant dense<0.000000e+00> : vector<8x32xf32>
    %127 = tpu.matmul %123, %126, %cst_44 {dimension_numbers = #tpu.dot_dimension_numbers<[1], [0], [0], [1], [0, 0, 1, 1], [], []>} : vector<8x32xbf16>, vector<32x32xbf16>, vector<8x32xf32> -> vector<8x32xf32>
    %128 = arith.addf %121, %127 : vector<8x32xf32>
    %c0_45 = arith.constant 0 : index
    %c0_46 = arith.constant 0 : index
    %129 = vector.load %arg10[%c0_45, %c0_46] : memref<8x32xf32, #tpu.memory_space<vmem>>, vector<8x32xf32>
    tpu.vector_store %arg10[%c0_45, %c0_46], %128 {strides = array<i32>} : memref<8x32xf32, #tpu.memory_space<vmem>>, vector<8x32xf32>,
    %c1_i32_47 = arith.constant 1 : i32
    %c0_48 = arith.constant 0 : index
    %c0_49 = arith.constant 0 : index
    %130 = vector.load %arg10[%c0_48, %c0_49] : memref<8x32xf32, #tpu.memory_space<vmem>>, vector<8x32xf32>
    %c0_50 = arith.constant 0 : index
    %c0_51 = arith.constant 0 : index
    %131 = vector.load %arg5[%c0_50, %c0_51] : memref<1x32xf32, #tpu.memory_space<vmem>>, vector<1x32xf32>
    %132 = vector.broadcast %131 : vector<1x32xf32> to vector<8x32xf32>
    %133 = arith.addf %130, %132 : vector<8x32xf32>
    %134 = vector.shape_cast %133 : vector<8x32xf32> to vector<1x8x32xf32>
    %c0_52 = arith.constant 0 : index
    %c0_53 = arith.constant 0 : index
    %c0_54 = arith.constant 0 : index
    %135 = vector.load %arg6[%c0_52, %c0_53, %c0_54] : memref<1x8x32xf32, #tpu.memory_space<vmem>>, vector<1x8x32xf32>
    tpu.vector_store %arg6[%c0_52, %c0_53, %c0_54], %134 {strides = array<i32>} : memref<1x8x32xf32, #tpu.memory_space<vmem>>, vector<1x8x32xf32>,
    return
  }
  func.func @transform_0(%arg0: i32) -> (i32, i32, i32) {
    %c0_i32 = arith.constant 0 : i32
    %c0_i32_0 = arith.constant 0 : i32
    %c0_i32_1 = arith.constant 0 : i32
    return %arg0, %c0_i32, %c0_i32_0 : i32, i32, i32
  }
  func.func @transform_1(%arg0: i32) -> (i32, i32, i32) {
    %c0_i32 = arith.constant 0 : i32
    %c0_i32_0 = arith.constant 0 : i32
    %c0_i32_1 = arith.constant 0 : i32
    %c0_i32_2 = arith.constant 0 : i32
    return %c0_i32, %c0_i32_0, %c0_i32_1 : i32, i32, i32
  }
  func.func @transform_2(%arg0: i32) -> (i32, i32, i32) {
    %c0_i32 = arith.constant 0 : i32
    %c0_i32_0 = arith.constant 0 : i32
    %c0_i32_1 = arith.constant 0 : i32
    %c0_i32_2 = arith.constant 0 : i32
    return %c0_i32, %c0_i32_0, %c0_i32_1 : i32, i32, i32
  }
  func.func @transform_3(%arg0: i32) -> (i32, i32, i32) {
    %c0_i32 = arith.constant 0 : i32
    %c0_i32_0 = arith.constant 0 : i32
    %c0_i32_1 = arith.constant 0 : i32
    %c0_i32_2 = arith.constant 0 : i32
    return %c0_i32, %c0_i32_0, %c0_i32_1 : i32, i32, i32
  }
  func.func @transform_4(%arg0: i32) -> (i32, i32) {
    %c0_i32 = arith.constant 0 : i32
    %c0_i32_0 = arith.constant 0 : i32
    %c0_i32_1 = arith.constant 0 : i32
    return %c0_i32, %c0_i32_0 : i32, i32
  }
  func.func @transform_5(%arg0: i32) -> (i32, i32, i32) {
    %c0_i32 = arith.constant 0 : i32
    %c0_i32_0 = arith.constant 0 : i32
    %c0_i32_1 = arith.constant 0 : i32
    return %arg0, %c0_i32, %c0_i32_0 : i32, i32, i32
  }
}

</mosaic_0001>

<llo_original>
// kernel: tpu_custom_call.1
$region0: #{tpu_custom_call.1}
  #allocation0 [shape = 'u32[]', space=smem, size = 0x4, offset = 0x4, fixed_abs, tag = 'smem constant byte address 0x4 - core index']
  #allocation1 [shape = 'u32[72,128]{1,0:T(1,128)}', space=vmem, size = 0x9000, scoped, tag = 'internal scratch']
  #allocation2 [shape = 'bf16[8,32]{1,0:T(8,128)(2,1)}', space=vmem, size = 0x800, scoped, tag = 'scratch operand']
  #allocation3 [shape = 'f32[8,96]{1,0:T(8,128)}', space=vmem, size = 0x1000, scoped, tag = 'scratch operand']
  #allocation4 [shape = 'f32[8,32]{1,0:T(8,128)}', space=vmem, size = 0x1000, scoped, tag = 'scratch operand']
  #allocation5 [shape = 'f32[8,32]{1,0:T(8,128)}', space=vmem, size = 0x1000, scoped, tag = 'scratch operand']
  %s0 = inlined_call_operand.hbm [shape: f32[2,8,32], index: 0, kind: input, shape index: {}]
  %s1 = inlined_call_operand.hbm [shape: bf16[1,32,96], index: 1, kind: input, shape index: {}]
  %s2 = inlined_call_operand.vmem [shape: f32[1,1,96], index: 2, kind: input, shape index: {}]
  %s3 = inlined_call_operand.hbm [shape: bf16[1,32,32], index: 3, kind: input, shape index: {}]
  %s4 = inlined_call_operand.vmem [shape: f32[1,32], index: 4, kind: input, shape index: {}]
  %s5 = inlined_call_operand.hbm [shape: f32[2,8,32], index: 5, kind: output, shape index: {}]
  %s6 = sld [smem:[#allocation0]]
  $region65: #{tpu_custom_call.1} parent=0
    _
  %s8 = ssub.s32 1, %s6
  %s9 = scalar_select 0, %s8, %s6
  $region1: #{tpu_custom_call.1} parent=0
    #allocation6 [shape = 'u8[8192]{0}', space=vmem, size = 0x2000, scoped, tag = 'input window, operand 0']
    #allocation7 [shape = 's32[2]{0}', space=sflag, size = 0x8, scoped, tag = 'scoped memory for tpu_custom_call.1']
    #allocation8 [shape = 's32[2]{0}', space=sflag, size = 0x8, scoped, tag = 'scoped memory for tpu_custom_call.1']
    #allocation9 [shape = 'u8[8192]{0}', space=vmem, size = 0x2000, scoped, tag = 'input window, operand 1, single buffered']
    #allocation10 [shape = 's32[1]{0}', space=sflag, size = 0x4, scoped, tag = 'scoped memory for tpu_custom_call.1']
    #allocation11 [shape = 'u8[8192]{0}', space=vmem, size = 0x2000, scoped, tag = 'input window, operand 3, single buffered']
    #allocation12 [shape = 'u8[8192]{0}', space=vmem, size = 0x2000, scoped, tag = 'output window, operand 0']
    %10 = vsyncpa [#allocation7], 0
    %s11 = scalar_lea.sflag [#allocation7], 1
    %12 = vsyncpa %s11, 0
    %13 = vsyncpa [#allocation10], 0
    %14 = vsyncpa [#allocation8], 0
    %s15 = scalar_lea.sflag [#allocation8], 1
    %16 = vsyncpa %s15, 0
    loop: start=0, step=1, limit=4
    $region2: #{tpu_custom_call.1} parent=1 // loop_pre_header
      _
    $region3: #{tpu_custom_call.1} parent=1 // loop_header
      %s18 = sphi 0, %s22
      %p19 = scmp.ge.s32.totalorder %s18, 4
      %s28 = sphi 0, %s30
      %s31 = sphi 0, %s28
      %s32 = sphi 0, %s31
      %s48 = sphi 0, %s32
      %s52 = sphi 0, %s52
      %s54 = sphi 0, %s52
      %s55 = sphi 0, %s54
      %s69 = sphi 0, %s55
      %s73 = sphi 0, %s73
      %s75 = sphi 0, %s73
      %s76 = sphi 0, %s75
      %s90 = sphi 0, %s76
      %s94 = sphi 0, %s94
      %s96 = sphi 0, %s94
      %s97 = sphi 0, %s96
      %s111 = sphi 0, %s97
      %s115 = sphi 0, %s115
      %s117 = sphi 0, %s115
      %s118 = sphi 0, %s117
      %s132 = sphi 0, %s118
      %s138 = sphi 0, %s140
      %s141 = sphi 0, %s138
      %s142 = sphi 0, %s141
      %s158 = sphi 0, %s142
    $region4: #{tpu_custom_call.1} parent=1 // loop_header_branch
      %21 = sbr.rel (%p19) target = $region8
    $region5: #{tpu_custom_call.1} parent=1 // loop_body
      %s23 = ssub.s32 %s18, 1
      %s24 = ssub.s32 %s18, 2
      %s25 = sadd.s32 %s18, 1
      %s26 = ssub.s32 %s18, %s25
      %p27 = scmp.eq.s32.totalorder %s26, 0
      %s29 = sadd.s32 %s28, 1
      %s30 = scalar_select %p27, %s28, %s29
      %p33 = pneg %p27
      %p34 = scmp.eq.s32.totalorder %s18, 1
      %p35 = por %p33, %p34
      %p36 = scmp.ne.s32.totalorder %s28, %s31
      %p37 = scmp.eq.s32.totalorder %s18, 0
      %p38 = por %p36, %p37
      %p39 = scmp.ne.s32.totalorder %s28, %s31
      %p40 = scmp.eq.s32.totalorder %s23, 1
      %p41 = por %p39, %p40
      %p42 = scmp.ne.s32.totalorder %s31, %s32
      %p43 = scmp.eq.s32.totalorder %s23, 0
      %p44 = por %p42, %p43
      %p45 = scmp.ne.s32.totalorder %s31, %s32
      %p46 = scmp.eq.s32.totalorder %s24, 1
      %p47 = por %p45, %p46
      %p49 = scmp.ne.s32.totalorder %s32, %s48
      %p50 = scmp.eq.s32.totalorder %s24, 0
      %p51 = por %p49, %p50
      %s53 = sadd.s32 %s52, 1
      %p56 = scmp.eq.s32.totalorder %s18, 1
      %p57 = scmp.ne.s32.totalorder %s52, %s54
      %p58 = scmp.eq.s32.totalorder %s18, 0
      %p59 = por %p57, %p58
      %p60 = scmp.ne.s32.totalorder %s52, %s54
      %p61 = scmp.eq.s32.totalorder %s23, 1
      %p62 = por %p60, %p61
      %p63 = scmp.ne.s32.totalorder %s54, %s55
      %p64 = scmp.eq.s32.totalorder %s23, 0
      %p65 = por %p63, %p64
      %p66 = scmp.ne.s32.totalorder %s54, %s55
      %p67 = scmp.eq.s32.totalorder %s24, 1
      %p68 = por %p66, %p67
      %p70 = scmp.ne.s32.totalorder %s55, %s69
      %p71 = scmp.eq.s32.totalorder %s24, 0
      %p72 = por %p70, %p71
      %s74 = sadd.s32 %s73, 1
      %p77 = scmp.eq.s32.totalorder %s18, 1
      %p78 = scmp.ne.s32.totalorder %s73, %s75
      %p79 = scmp.eq.s32.totalorder %s18, 0
      %p80 = por %p78, %p79
      %p81 = scmp.ne.s32.totalorder %s73, %s75
      %p82 = scmp.eq.s32.totalorder %s23, 1
      %p83 = por %p81, %p82
      %p84 = scmp.ne.s32.totalorder %s75, %s76
      %p85 = scmp.eq.s32.totalorder %s23, 0
      %p86 = por %p84, %p85
      %p87 = scmp.ne.s32.totalorder %s75, %s76
      %p88 = scmp.eq.s32.totalorder %s24, 1
      %p89 = por %p87, %p88
      %p91 = scmp.ne.s32.totalorder %s76, %s90
      %p92 = scmp.eq.s32.totalorder %s24, 0
      %p93 = por %p91, %p92
      %s95 = sadd.s32 %s94, 1
      %p98 = scmp.eq.s32.totalorder %s18, 1
      %p99 = scmp.ne.s32.totalorder %s94, %s96
      %p100 = scmp.eq.s32.totalorder %s18, 0
      %p101 = por %p99, %p100
      %p102 = scmp.ne.s32.totalorder %s94, %s96
      %p103 = scmp.eq.s32.totalorder %s23, 1
      %p104 = por %p102, %p103
      %p105 = scmp.ne.s32.totalorder %s96, %s97
      %p106 = scmp.eq.s32.totalorder %s23, 0
      %p107 = por %p105, %p106
      %p108 = scmp.ne.s32.totalorder %s96, %s97
      %p109 = scmp.eq.s32.totalorder %s24, 1
      %p110 = por %p108, %p109
      %p112 = scmp.ne.s32.totalorder %s97, %s111
      %p113 = scmp.eq.s32.totalorder %s24, 0
      %p114 = por %p112, %p113
      %s116 = sadd.s32 %s115, 1
      %p119 = scmp.eq.s32.totalorder %s18, 1
      %p120 = scmp.ne.s32.totalorder %s115, %s117
      %p121 = scmp.eq.s32.totalorder %s18, 0
      %p122 = por %p120, %p121
      %p123 = scmp.ne.s32.totalorder %s115, %s117
      %p124 = scmp.eq.s32.totalorder %s23, 1
      %p125 = por %p123, %p124
      %p126 = scmp.ne.s32.totalorder %s117, %s118
      %p127 = scmp.eq.s32.totalorder %s23, 0
      %p128 = por %p126, %p127
      %p129 = scmp.ne.s32.totalorder %s117, %s118
      %p130 = scmp.eq.s32.totalorder %s24, 1
      %p131 = por %p129, %p130
      %p133 = scmp.ne.s32.totalorder %s118, %s132
      %p134 = scmp.eq.s32.totalorder %s24, 0
      %p135 = por %p133, %p134
      %s136 = ssub.s32 %s18, %s25
      %p137 = scmp.eq.s32.totalorder %s136, 0
      %s139 = sadd.s32 %s138, 1
      %s140 = scalar_select %p137, %s138, %s139
      %p143 = pneg %p137
      %p144 = scmp.eq.s32.totalorder %s18, 1
      %p145 = por %p143, %p144
      %p146 = scmp.ne.s32.totalorder %s138, %s141
      %p147 = scmp.eq.s32.totalorder %s18, 0
      %p148 = por %p146, %p147
      %p149 = scmp.ne.s32.totalorder %s138, %s141
      %p150 = scmp.eq.s32.totalorder %s23, 1
      %p151 = por %p149, %p150
      %p152 = scmp.ne.s32.totalorder %s141, %s142
      %p153 = scmp.eq.s32.totalorder %s23, 0
      %p154 = por %p152, %p153
      %p155 = scmp.ne.s32.totalorder %s141, %s142
      %p156 = scmp.eq.s32.totalorder %s24, 1
      %p157 = por %p155, %p156
      %p159 = scmp.ne.s32.totalorder %s142, %s158
      %p160 = scmp.eq.s32.totalorder %s24, 0
      %p161 = por %p159, %p160
      %p162 = scmp.le.s32.totalorder 1, %s18
      %p163 = scmp.lt.s32.totalorder %s18, 3
      %p164 = pnand %p162, %p163
      %p165 = pneg %p164
      // Predicated region
      $region9: #{tpu_custom_call.1} parent=5 // pred_check
        _
      $region10: #{tpu_custom_call.1} parent=5 // pred_check_branch
        %167 = sbr.rel (%p164) target = $region12
      $region11: #{tpu_custom_call.1} parent=5 // pred_region
        %s168 = ssub.s32 %s18, 1
        // Predicated region
        $region13: #{tpu_custom_call.1} parent=11 // pred_check
          %p169 = pneg %p65
        $region14: #{tpu_custom_call.1} parent=11 // pred_check_branch
          %171 = sbr.rel (%p169) target = $region16
        $region15: #{tpu_custom_call.1} parent=11 // pred_region
          %173 = vsyncadd [#allocation10], 0
          %s174 = sshll.u32 %s1, 4
          %s175 = int_to_ptr.hbm [resolvable:$true] %s174
          %s176 = sshll.u32 [#allocation9], 4
          %s177 = int_to_ptr.vmem [resolvable:$true] %s176
          %182 = dma.hbm_to_vmem [thread:$0]  %s175, 256, %s177, [#allocation10], 64, 64, 4
        $region16: #{tpu_custom_call.1} parent=11 // pred_fallthru
          _
        // Predicated region
        $region17: #{tpu_custom_call.1} parent=11 // pred_check
          %p183 = pneg %p86
        $region18: #{tpu_custom_call.1} parent=11 // pred_check_branch
          %185 = sbr.rel (%p183) target = $region20
        $region19: #{tpu_custom_call.1} parent=11 // pred_region
          _
        $region20: #{tpu_custom_call.1} parent=11 // pred_fallthru
          _
        // Predicated region
        $region21: #{tpu_custom_call.1} parent=11 // pred_check
          %p186 = pneg %p107
        $region22: #{tpu_custom_call.1} parent=11 // pred_check_branch
          %188 = sbr.rel (%p186) target = $region24
        $region23: #{tpu_custom_call.1} parent=11 // pred_region
          %190 = vsyncadd [#allocation10], 0
          %s191 = sshll.u32 %s3, 4
          %s192 = int_to_ptr.hbm [resolvable:$true] %s191
          %s193 = sshll.u32 [#allocation11], 4
          %s194 = int_to_ptr.vmem [resolvable:$true] %s193
          %199 = dma.hbm_to_vmem [thread:$0]  %s192, 256, %s194, [#allocation10], 64, 64, 4
        $region24: #{tpu_custom_call.1} parent=11 // pred_fallthru
          _
        // Predicated region
        $region25: #{tpu_custom_call.1} parent=11 // pred_check
          %p200 = pneg %p128
        $region26: #{tpu_custom_call.1} parent=11 // pred_check_branch
          %202 = sbr.rel (%p200) target = $region28
        $region27: #{tpu_custom_call.1} parent=11 // pred_region
          _
        $region28: #{tpu_custom_call.1} parent=11 // pred_fallthru
          _
      $region12: #{tpu_custom_call.1} parent=5 // pred_fallthru
        _
      %p203 = scmp.lt.s32.totalorder %s18, 2
      // Predicated region
      $region29: #{tpu_custom_call.1} parent=5 // pred_check
        %p204 = pneg %p203
      $region30: #{tpu_custom_call.1} parent=5 // pred_check_branch
        %206 = sbr.rel (%p204) target = $region32
      $region31: #{tpu_custom_call.1} parent=5 // pred_region
        // Predicated region
        $region33: #{tpu_custom_call.1} parent=31 // pred_check
          %p207 = pneg %p38
        $region34: #{tpu_custom_call.1} parent=31 // pred_check_branch
          %209 = sbr.rel (%p207) target = $region36
        $region35: #{tpu_custom_call.1} parent=31 // pred_region
          %s210 = sand.u32 %s28, 1
          %s211 = scalar_lea.sflag [#allocation7], %s210
          %s212 = sand.u32 %s28, 1
          %s213 = smul.addr %s212, 8
          %s214 = scalar_lea.vmem [#allocation6], %s213
          %216 = vsyncadd %s211, 0
          %s217 = smul.addr %s18, 8
          %s218 = scalar_lea.hbm %s0, %s217
          %s220 = sshll.u32 %s218, 4
          %s221 = int_to_ptr.hbm [resolvable:$true] %s220
          %s222 = sshll.u32 %s214, 4
          %s223 = int_to_ptr.vmem [resolvable:$true] %s222
          %225 = dma.hbm_to_vmem [thread:$0]  %s221, 128, %s223, %s211
        $region36: #{tpu_custom_call.1} parent=31 // pred_fallthru
          _
      $region32: #{tpu_custom_call.1} parent=5 // pred_fallthru
        _
      %p226 = scmp.le.s32.totalorder 1, %s18
      %p227 = scmp.lt.s32.totalorder %s18, 3
      %p228 = pnand %p226, %p227
      %p229 = pneg %p228
      // Predicated region
      $region37: #{tpu_custom_call.1} parent=5 // pred_check
        _
      $region38: #{tpu_custom_call.1} parent=5 // pred_check_branch
        %231 = sbr.rel (%p228) target = $region40
      $region39: #{tpu_custom_call.1} parent=5 // pred_region
        %s232 = ssub.s32 %s18, 1
        %s233 = sand.u32 %s31, 1
        %s234 = scalar_lea.sflag [#allocation7], %s233
        %s235 = sand.u32 %s31, 1
        %s236 = smul.addr %s235, 8
        %s237 = scalar_lea.vmem [#allocation6], %s236
        // Predicated region
        $region41: #{tpu_custom_call.1} parent=39 // pred_check
          %p238 = pneg %p44
        $region42: #{tpu_custom_call.1} parent=39 // pred_check_branch
          %240 = sbr.rel (%p238) target = $region44
        $region43: #{tpu_custom_call.1} parent=39 // pred_region
          %242 = dma.done %s234, 128
        $region44: #{tpu_custom_call.1} parent=39 // pred_fallthru
          _
        // Predicated region
        $region45: #{tpu_custom_call.1} parent=39 // pred_check
          %p243 = pneg %p65
        $region46: #{tpu_custom_call.1} parent=39 // pred_check_branch
          %245 = sbr.rel (%p243) target = $region48
        $region47: #{tpu_custom_call.1} parent=39 // pred_region
          %247 = dma.done [#allocation10], 256
        $region48: #{tpu_custom_call.1} parent=39 // pred_fallthru
          _
        // Predicated region
        $region49: #{tpu_custom_call.1} parent=39 // pred_check
          %p248 = pneg %p107
        $region50: #{tpu_custom_call.1} parent=39 // pred_check_branch
          %250 = sbr.rel (%p248) target = $region52
        $region51: #{tpu_custom_call.1} parent=39 // pred_region
          %252 = dma.done [#allocation10], 256
        $region52: #{tpu_custom_call.1} parent=39 // pred_fallthru
          _
        %s253 = sand.u32 %s31, 1
        %s254 = scalar_lea.sflag [#allocation7], %s253
        %s255 = sand.u32 %s31, 1
        %s256 = smul.addr %s255, 8
        %s257 = scalar_lea.vmem [#allocation6], %s256
        %p258 = pneg %p44
        %p259 = pneg %p41
        %p260 = pneg %p65
        %p261 = pneg %p62
        %p262 = pneg %p86
        %p263 = pneg %p83
        %p264 = pneg %p107
        %p265 = pneg %p104
        %p266 = pneg %p128
        %p267 = pneg %p125
        %p268 = pneg %p154
        %p269 = pneg %p151
        %s270 = sand.u32 %s141, 1
        %s271 = scalar_lea.sflag [#allocation8], %s270
        %s272 = sand.u32 %s141, 1
        %s273 = smul.addr %s272, 8
        %s274 = scalar_lea.vmem [#allocation12], %s273
        %v276 = vld [vmem:[%s237] sm:$0xff]
        %v277 = vpack.c.bf16 %v276, %v276
        %vm278 = vcmask 257024
        %279 = vst.msk [vmem:[#allocation2] sm:$0xf] %vm278, %v277
        %vm280 = vcmask 261120
        %281 = vst.msk [vmem:[#allocation5] sm:$0xff] %vm280, 0.0
        %v282 = vld [vmem:[#allocation2] sm:$0xf]
        %v283 = vld [vmem:[#allocation9] sm:$0xf]
        %v284 = vld [vmem:[#allocation9 + $0x4] sm:$0xf]
        %v285 = vld [vmem:[#allocation9 + $0x8] sm:$0xf]
        %v286 = vld [vmem:[#allocation9 + $0xc] sm:$0xf]
        %v287 = vld [vmem:[%s2] sm:$0x1]
        %v289 = vperm.slane %v287, 0
        %v295 = vunpack.c.l.b16 %v283
        %v296 = vunpack.c.l.b16 %v284
        %v297 = vunpack.c.l.b16 %v285
        %v298 = vunpack.c.l.b16 %v286
        %v299 = vpack.c.b16 %v296, %v295
        %v300 = vpack.c.b16 %v298, %v297
        %v304 = vsel %vm280, %v282, 0
        %306 = vmatpush.bf16.msra.mxu0 0
        %307 = vmatpush.bf16.msra.mxu0 0
        %308 = vmatpush.bf16.msra.mxu0 0
        %309 = vmatpush.bf16.msra.mxu0 0
        %310 = vmatpush.bf16.msra.mxu0 0
        %311 = vmatpush.bf16.msra.mxu0 0
        %312 = vmatpush.bf16.msra.mxu0 %v300
        %313 = vmatpush.bf16.msra.mxu0 %v299
        %314 = vmatmul.bf16.gmra.mxu0 %v304
        %v315 = vpop.f32.mrf.mxu0
        %v316 = vadd.f32 %v289, %v315
        %v317 = vpop.f32.mrf.mxu0
        %318 = vdwg.mxu0
        %vm319 = vcmask 785408
        %320 = vst.msk [vmem:[#allocation3] sm:$0xff] %vm319, %v316
        %v321 = vld [vmem:[#allocation3] sm:$0xff]
        %v322 = vpack.c.bf16 %v321, %v321
        %324 = vrot.lane.b32.xlu0 %v322, 96
        %v325 = vpop.permute.xlu0 %324
        %vm326 = vcmask 64512
        %v328 = vsel %vm326, %v322, 0
        %v331 = vsel %vm326, %v325, 0
        %333 = vmatpush.bf16.xpose.msra.mxu0 0
        %334 = vmatpush.bf16.xpose.msra.mxu0 0
        %335 = vmatpush.bf16.xpose.msra.mxu0 0
        %336 = vmatpush.bf16.xpose.msra.mxu0 0
        %337 = vmatpush.bf16.xpose.msra.mxu0 0
        %338 = vmatpush.bf16.xpose.msra.mxu0 0
        %339 = vmatpush.bf16.xpose.msra.mxu0 0
        %340 = vmatpush.bf16.xpose.msra.mxu0 %v331
        %341 = vmatmul.bf16.gmra.mxu0 %v328
        %v342 = vpop.f32.mrf.mxu0
        %v343 = vadd.f32 0.0, %v342
        %v344 = vpop.f32.mrf.mxu0
        %345 = vdwg.mxu0
        %v346 = vsel %vm326, %v343, -inf
        %347 = vmax.xlane.f32.xlu0 %v346
        %v348 = vpop.xlane.xlu0 %347
        %v349 = vsub.f32 %v343, %v348
        %v350 = vmul.f32 %v349, 1.442695
        %v351 = vpow.pop %v350
        %v352 = vsel %vm326, %v351, 0.0
        %353 = vadd.xlane.f32.xlu0 %v352
        %v354 = vpop.xlane.xlu0 %353
        %v355 = vrcp.pop %v354
        %v356 = vmul.f32 %v354, %v355
        %v357 = vsub.f32 2.0, %v356
        %v358 = vmul.f32 %v355, %v357
        %v359 = vmul.f32 %v351, %v358
        %v360 = vpack.c.bf16 %v359, %v359
        %361 = vrot.lane.b32.xlu0 %v322, 64
        %v362 = vpop.permute.xlu0 %361
        %v364 = vsel %vm326, %v360, 0
        %vm366 = vcmask 1043456
        %v368 = vsel %vm366, %v362, 0
        %370 = vmatpush.bf16.msra.mxu0 0
        %371 = vmatpush.bf16.msra.mxu0 0
        %372 = vmatpush.bf16.msra.mxu0 0
        %373 = vmatpush.bf16.msra.mxu0 0
        %374 = vmatpush.bf16.msra.mxu0 0
        %375 = vmatpush.bf16.msra.mxu0 0
        %376 = vmatpush.bf16.msra.mxu0 0
        %377 = vmatpush.bf16.msra.mxu0 %v368
        %378 = vmatmul.bf16.gmra.mxu0 %v364
        %v379 = vpop.f32.mrf.mxu0
        %v380 = vadd.f32 0.0, %v379
        %v381 = vpop.f32.mrf.mxu0
        %382 = vdwg.mxu0
        %383 = vst.msk [vmem:[#allocation4] sm:$0xff] %vm326, %v380
        %384 = vrot.lane.b32.xlu0 %v322, 120
        %v385 = vpop.permute.xlu0 %384
        %386 = vrot.lane.b32.xlu0 %v322, 88
        %v387 = vpop.permute.xlu0 %386
        %v389 = vsel %vm326, %v385, 0
        %v392 = vsel %vm326, %v387, 0
        %394 = vmatpush.bf16.xpose.msra.mxu0 0
        %395 = vmatpush.bf16.xpose.msra.mxu0 0
        %396 = vmatpush.bf16.xpose.msra.mxu0 0
        %397 = vmatpush.bf16.xpose.msra.mxu0 0
        %398 = vmatpush.bf16.xpose.msra.mxu0 0
        %399 = vmatpush.bf16.xpose.msra.mxu0 0
        %400 = vmatpush.bf16.xpose.msra.mxu0 0
        %401 = vmatpush.bf16.xpose.msra.mxu0 %v392
        %402 = vmatmul.bf16.gmra.mxu0 %v389
        %v403 = vpop.f32.mrf.mxu0
        %v404 = vadd.f32 0.0, %v403
        %v405 = vpop.f32.mrf.mxu0
        %406 = vdwg.mxu0
        %v407 = vsel %vm326, %v404, -inf
        %408 = vmax.xlane.f32.xlu0 %v407
        %v409 = vpop.xlane.xlu0 %408
        %v410 = vsub.f32 %v404, %v409
        %v411 = vmul.f32 %v410, 1.442695
        %v412 = vpow.pop %v411
        %v413 = vsel %vm326, %v412, 0.0
        %414 = vadd.xlane.f32.xlu0 %v413
        %v415 = vpop.xlane.xlu0 %414
        %v416 = vrcp.pop %v415
        %v417 = vmul.f32 %v415, %v416
        %v418 = vsub.f32 2.0, %v417
        %v419 = vmul.f32 %v416, %v418
        %v420 = vmul.f32 %v412, %v419
        %v421 = vpack.c.bf16 %v420, %v420
        %422 = vrot.lane.b32.xlu0 %v322, 56
        %v423 = vpop.permute.xlu0 %422
        %v425 = vsel %vm326, %v421, 0
        %v428 = vsel %vm366, %v423, 0
        %430 = vmatpush.bf16.msra.mxu0 0
        %431 = vmatpush.bf16.msra.mxu0 0
        %432 = vmatpush.bf16.msra.mxu0 0
        %433 = vmatpush.bf16.msra.mxu0 0
        %434 = vmatpush.bf16.msra.mxu0 0
        %435 = vmatpush.bf16.msra.mxu0 0
        %436 = vmatpush.bf16.msra.mxu0 0
        %437 = vmatpush.bf16.msra.mxu0 %v428
        %438 = vmatmul.bf16.gmra.mxu0 %v425
        %v439 = vpop.f32.mrf.mxu0
        %v440 = vadd.f32 0.0, %v439
        %v441 = vpop.f32.mrf.mxu0
        %442 = vdwg.mxu0
        %444 = vrot.lane.b32.xlu0 %v440, 8
        %v445 = vpop.permute.xlu0 %444
        %vm447 = vcmask 130112
        %448 = vst.msk [vmem:[#allocation4] sm:$0xff] %vm447, %v445
        %449 = vrot.lane.b32.xlu0 %v322, 112
        %v450 = vpop.permute.xlu0 %449
        %451 = vrot.lane.b32.xlu0 %v322, 80
        %v452 = vpop.permute.xlu0 %451
        %v454 = vsel %vm326, %v450, 0
        %v457 = vsel %vm326, %v452, 0
        %459 = vmatpush.bf16.xpose.msra.mxu0 0
        %460 = vmatpush.bf16.xpose.msra.mxu0 0
        %461 = vmatpush.bf16.xpose.msra.mxu0 0
        %462 = vmatpush.bf16.xpose.msra.mxu0 0
        %463 = vmatpush.bf16.xpose.msra.mxu0 0
        %464 = vmatpush.bf16.xpose.msra.mxu0 0
        %465 = vmatpush.bf16.xpose.msra.mxu0 0
        %466 = vmatpush.bf16.xpose.msra.mxu0 %v457
        %467 = vmatmul.bf16.gmra.mxu0 %v454
        %v468 = vpop.f32.mrf.mxu0
        %v469 = vadd.f32 0.0, %v468
        %v470 = vpop.f32.mrf.mxu0
        %471 = vdwg.mxu0
        %v472 = vsel %vm326, %v469, -inf
        %473 = vmax.xlane.f32.xlu0 %v472
        %v474 = vpop.xlane.xlu0 %473
        %v475 = vsub.f32 %v469, %v474
        %v476 = vmul.f32 %v475, 1.442695
        %v477 = vpow.pop %v476
        %v478 = vsel %vm326, %v477, 0.0
        %479 = vadd.xlane.f32.xlu0 %v478
        %v480 = vpop.xlane.xlu0 %479
        %v481 = vrcp.pop %v480
        %v482 = vmul.f32 %v480, %v481
        %v483 = vsub.f32 2.0, %v482
        %v484 = vmul.f32 %v481, %v483
        %v485 = vmul.f32 %v477, %v484
        %v486 = vpack.c.bf16 %v485, %v485
        %487 = vrot.lane.b32.xlu0 %v322, 48
        %v488 = vpop.permute.xlu0 %487
        %v490 = vsel %vm326, %v486, 0
        %v493 = vsel %vm366, %v488, 0
        %495 = vmatpush.bf16.msra.mxu0 0
        %496 = vmatpush.bf16.msra.mxu0 0
        %497 = vmatpush.bf16.msra.mxu0 0
        %498 = vmatpush.bf16.msra.mxu0 0
        %499 = vmatpush.bf16.msra.mxu0 0
        %500 = vmatpush.bf16.msra.mxu0 0
        %501 = vmatpush.bf16.msra.mxu0 0
        %502 = vmatpush.bf16.msra.mxu0 %v493
        %503 = vmatmul.bf16.gmra.mxu0 %v490
        %v504 = vpop.f32.mrf.mxu0
        %v505 = vadd.f32 0.0, %v504
        %v506 = vpop.f32.mrf.mxu0
        %507 = vdwg.mxu0
        %509 = vrot.lane.b32.xlu0 %v505, 16
        %v510 = vpop.permute.xlu0 %509
        %vm512 = vcmask 195712
        %513 = vst.msk [vmem:[#allocation4] sm:$0xff] %vm512, %v510
        %514 = vrot.lane.b32.xlu0 %v322, 104
        %v515 = vpop.permute.xlu0 %514
        %516 = vrot.lane.b32.xlu0 %v322, 72
        %v517 = vpop.permute.xlu0 %516
        %v519 = vsel %vm326, %v515, 0
        %v522 = vsel %vm326, %v517, 0
        %524 = vmatpush.bf16.xpose.msra.mxu0 0
        %525 = vmatpush.bf16.xpose.msra.mxu0 0
        %526 = vmatpush.bf16.xpose.msra.mxu0 0
        %527 = vmatpush.bf16.xpose.msra.mxu0 0
        %528 = vmatpush.bf16.xpose.msra.mxu0 0
        %529 = vmatpush.bf16.xpose.msra.mxu0 0
        %530 = vmatpush.bf16.xpose.msra.mxu0 0
        %531 = vmatpush.bf16.xpose.msra.mxu0 %v522
        %532 = vmatmul.bf16.gmra.mxu0 %v519
        %v533 = vpop.f32.mrf.mxu0
        %v534 = vadd.f32 0.0, %v533
        %v535 = vpop.f32.mrf.mxu0
        %536 = vdwg.mxu0
        %v537 = vsel %vm326, %v534, -inf
        %538 = vmax.xlane.f32.xlu0 %v537
        %v539 = vpop.xlane.xlu0 %538
        %v540 = vsub.f32 %v534, %v539
        %v541 = vmul.f32 %v540, 1.442695
        %v542 = vpow.pop %v541
        %v543 = vsel %vm326, %v542, 0.0
        %544 = vadd.xlane.f32.xlu0 %v543
        %v545 = vpop.xlane.xlu0 %544
        %v546 = vrcp.pop %v545
        %v547 = vmul.f32 %v545, %v546
        %v548 = vsub.f32 2.0, %v547
        %v549 = vmul.f32 %v546, %v548
        %v550 = vmul.f32 %v542, %v549
        %v551 = vpack.c.bf16 %v550, %v550
        %552 = vrot.lane.b32.xlu0 %v322, 40
        %v553 = vpop.permute.xlu0 %552
        %v555 = vsel %vm326, %v551, 0
        %v558 = vsel %vm366, %v553, 0
        %560 = vmatpush.bf16.msra.mxu0 0
        %561 = vmatpush.bf16.msra.mxu0 0
        %562 = vmatpush.bf16.msra.mxu0 0
        %563 = vmatpush.bf16.msra.mxu0 0
        %564 = vmatpush.bf16.msra.mxu0 0
        %565 = vmatpush.bf16.msra.mxu0 0
        %566 = vmatpush.bf16.msra.mxu0 0
        %567 = vmatpush.bf16.msra.mxu0 %v558
        %568 = vmatmul.bf16.gmra.mxu0 %v555
        %v569 = vpop.f32.mrf.mxu0
        %v570 = vadd.f32 0.0, %v569
        %v571 = vpop.f32.mrf.mxu0
        %572 = vdwg.mxu0
        %574 = vrot.lane.b32.xlu0 %v570, 24
        %v575 = vpop.permute.xlu0 %574
        %vm577 = vcmask 261312
        %578 = vst.msk [vmem:[#allocation4] sm:$0xff] %vm577, %v575
        %v579 = vld [vmem:[#allocation5] sm:$0xff]
        %v580 = vld [vmem:[#allocation4] sm:$0xff]
        %v581 = vpack.c.bf16 %v580, %v580
        %v582 = vld [vmem:[#allocation11] sm:$0xf]
        %v583 = vld [vmem:[#allocation11 + $0x4] sm:$0xf]
        %v584 = vld [vmem:[#allocation11 + $0x8] sm:$0xf]
        %v585 = vld [vmem:[#allocation11 + $0xc] sm:$0xf]
        %v590 = vunpack.c.l.b16 %v582
        %v591 = vunpack.c.l.b16 %v583
        %v592 = vunpack.c.l.b16 %v584
        %v593 = vunpack.c.l.b16 %v585
        %v594 = vpack.c.b16 %v591, %v590
        %v595 = vpack.c.b16 %v593, %v592
        %v599 = vsel %vm280, %v581, 0
        %601 = vmatpush.bf16.msra.mxu0 0
        %602 = vmatpush.bf16.msra.mxu0 0
        %603 = vmatpush.bf16.msra.mxu0 0
        %604 = vmatpush.bf16.msra.mxu0 0
        %605 = vmatpush.bf16.msra.mxu0 0
        %606 = vmatpush.bf16.msra.mxu0 0
        %607 = vmatpush.bf16.msra.mxu0 %v595
        %608 = vmatpush.bf16.msra.mxu0 %v594
        %609 = vmatmul.bf16.gmra.mxu0 %v599
        %v610 = vpop.f32.mrf.mxu0
        %v611 = vadd.f32 0.0, %v610
        %v612 = vpop.f32.mrf.mxu0
        %613 = vdwg.mxu0
        %v614 = vadd.f32 %v579, %v611
        %615 = vst.msk [vmem:[#allocation5] sm:$0xff] %vm280, %v614
        %v616 = vld [vmem:[#allocation5] sm:$0xff]
        %v617 = vld [vmem:[%s4] sm:$0x1]
        %v619 = vperm.slane %v617, 0
        %v621 = vadd.f32 %v616, %v619
        %622 = vst.msk [vmem:[%s274] sm:$0xff] %vm280, %v621
        %s623 = sand.u32 %s141, 1
        %s624 = scalar_lea.sflag [#allocation8], %s623
        %s625 = sand.u32 %s141, 1
        %s626 = smul.addr %s625, 8
        %s627 = scalar_lea.vmem [#allocation12], %s626
        // Predicated region
        $region53: #{tpu_custom_call.1} parent=39 // pred_check
          %p628 = pneg %p151
        $region54: #{tpu_custom_call.1} parent=39 // pred_check_branch
          %630 = sbr.rel (%p628) target = $region56
        $region55: #{tpu_custom_call.1} parent=39 // pred_region
          %632 = vsyncadd %s624, 0
          %s633 = smul.addr %s23, 8
          %s634 = scalar_lea.hbm %s5, %s633
          %s636 = sshll.u32 %s627, 4
          %s637 = int_to_ptr.vmem [resolvable:$true] %s636
          %s638 = sshll.u32 %s634, 4
          %s639 = int_to_ptr.hbm [resolvable:$true] %s638
          %641 = dma.vmem_to_hbm [thread:$0]  %s637, 128, %s639, %s624
        $region56: #{tpu_custom_call.1} parent=39 // pred_fallthru
          _
      $region40: #{tpu_custom_call.1} parent=5 // pred_fallthru
        _
      %p642 = scmp.le.s32.totalorder 2, %s18
      // Predicated region
      $region57: #{tpu_custom_call.1} parent=5 // pred_check
        %p643 = pneg %p642
      $region58: #{tpu_custom_call.1} parent=5 // pred_check_branch
        %645 = sbr.rel (%p643) target = $region60
      $region59: #{tpu_custom_call.1} parent=5 // pred_region
        %s646 = ssub.s32 %s18, 2
        // Predicated region
        $region61: #{tpu_custom_call.1} parent=59 // pred_check
          %p647 = pneg %p157
        $region62: #{tpu_custom_call.1} parent=59 // pred_check_branch
          %649 = sbr.rel (%p647) target = $region64
        $region63: #{tpu_custom_call.1} parent=59 // pred_region
          %s650 = sand.u32 %s142, 1
          %s651 = scalar_lea.sflag [#allocation8], %s650
          %s652 = sand.u32 %s142, 1
          %s653 = smul.addr %s652, 8
          %s654 = scalar_lea.vmem [#allocation12], %s653
          %656 = dma.done %s651, 128
        $region64: #{tpu_custom_call.1} parent=59 // pred_fallthru
          _
      $region60: #{tpu_custom_call.1} parent=5 // pred_fallthru
        _
    $region6: #{tpu_custom_call.1} parent=1 // loop_footer
      %s22 = sadd.s32 1, %s18
    $region7: #{tpu_custom_call.1} parent=1 // loop_footer_branch
      %17 = sbr.rel target = $region3
    $region8: #{tpu_custom_call.1} parent=1 // loop_exit
      _
    %657 = vsyncpa [#allocation7], 1
    %s658 = scalar_lea.sflag [#allocation7], 1
    %659 = vsyncpa %s658, 1
    %660 = vsyncpa [#allocation10], 1
    %661 = vsyncpa [#allocation8], 1
    %s662 = scalar_lea.sflag [#allocation8], 1
    %663 = vsyncpa %s662, 1

</llo_original>
